<compile_context>
chip_gen: v5e
topology: v5e:2x2
jax: 0.10.0
libtpu: 0.0.40
codegen_flags: <defaults>
</compile_context>

<pallas_src>
import jax
import jax.numpy as jnp
from jax.experimental import pallas as pl
from jax.experimental.pallas import tpu as pltpu


def _sse_kernel_vpu(x_ref, w_ref, b_ref, o_ref):
    """Gate on the VPU via broadcast FMAs (small C).

    x_ref/o_ref: (Nb, C, TM)  lane-dense spatial tile (possibly Nb images)
    w_ref:       (C, C)       conv weight (C_out, C_in), resident in VMEM
    b_ref:       (C, 1)       f32 bias column, resident in VMEM
    """
    x = x_ref[...]                                        # (Nb, C, TM), native dtype
    wf = w_ref[...].astype(jnp.float32)                   # (C, C), tiny
    c = x.shape[1]

    logits = jnp.broadcast_to(b_ref[...][None, :, :], x.shape)        # (Nb, C, TM) f32
    for ci in range(c):                                               # unrolled: C FMAs
        logits = logits + (wf[:, ci:ci + 1][None, :, :] *
                           x[:, ci:ci + 1, :].astype(jnp.float32))
    gate = jax.nn.sigmoid(logits).astype(o_ref.dtype)
    o_ref[...] = x * gate                                 # multiply in native dtype


def _sse_kernel_mxu(x_ref, w_ref, b_ref, o_ref):
    """Gate on the MXU (larger C).  Weight in native dtype, f32 accumulation.

    jnp.dot runs at default TPU matmul precision; for f32 inputs this is slightly
    looser than a Precision.HIGHEST reference (documented ~1e-4 tolerance).
    """
    w = w_ref[...]                                        # (C, C)
    b = b_ref[...]                                        # (C, 1) f32
    nb = x_ref.shape[0]
    for i in range(nb):                                   # static unroll over image block
        x = x_ref[i]                                      # (C, TM)
        logits = jnp.dot(w, x, preferred_element_type=jnp.float32) + b
        gate = jax.nn.sigmoid(logits).astype(o_ref.dtype)
        o_ref[i] = x * gate                               # multiply in native dtype


def _round_down_128(v):
    return max(128, (int(v) // 128) * 128)


def _largest_divisor_leq(n, k):
    k = max(1, min(int(n), int(k)))
    while n % k:
        k -= 1
    return k


def _chip_vmem_limit_bytes():
    phys = None
    try:
        phys = getattr(pltpu.get_tpu_info(), "vmem_capacity_bytes", None)
    except Exception:
        phys = None
    if not phys:
        phys = 64 * 1024 * 1024        # conservative fallback (v7x per-TC VMEM)
    # Half of physical VMEM, capped at 64 MiB: 64 MiB on v5e/v6e, 32 MiB on v7x.
    return int(min(int(phys) // 2, 64 * 1024 * 1024))


def sse_forward(x_nchw, weight, bias, *, vpu_channel_cutoff=8,
                target_tile_bytes=4 * 1024 * 1024, vmem_limit_bytes=None):
    """y = x * sigmoid(conv1x1(x)).   x: (N, C, H, W); weight: (C, C); bias: (C,)."""
    N, C, H, W = x_nchw.shape
    M = H * W
    x3 = x_nchw.reshape(N, C, M)                          # free reshape, stays NCHW

    if weight.dtype != x_nchw.dtype:
        weight = weight.astype(x_nchw.dtype)
    b_col = bias.reshape(C, 1).astype(jnp.float32)

    itemsize = jnp.dtype(x_nchw.dtype).itemsize
    w_itemsize = jnp.dtype(weight.dtype).itemsize
    use_mxu = C > vpu_channel_cutoff

    # ---- VMEM accounting -------------------------------------------------------
    if vmem_limit_bytes is None:
        vmem_limit_bytes = _chip_vmem_limit_bytes()
    # Resident weight/bias are still double-buffered by the pipeline.
    fixed_bytes = 2 * (C * C * w_itemsize + C * 4)
    slack_bytes = 2 * 1024 * 1024
    tile_budget = vmem_limit_bytes - fixed_bytes - slack_bytes
    # Per tile element: in + out double-buffered in native dtype, plus ~2 f32
    # intermediates (logits, gate) materialised inside the kernel body.
    per_elem = 4 * itemsize + 8
    min_tile_elems = C * min(M, 128)
    max_tile_elems = max(min_tile_elems, tile_budget // per_elem)
    tgt_tile_elems = max(min_tile_elems,
                         min(max_tile_elems, target_tile_bytes // itemsize))
    # TODO(synk): very large C (weight itself ~VMEM-sized) would also need tiling of
    # the channel/contraction dimension; not needed for typical SSE channel counts.

    # ---- choose the (Nb, C, tm) tile --------------------------------------------
    img_elems = C * M
    if img_elems <= tgt_tile_elems:
        tm = M                                            # whole image(s), lane-dense
        nb_cap = 32 if use_mxu else 256                   # bound the MXU per-image unroll
        nb = _largest_divisor_leq(N, min(N, nb_cap, tgt_tile_elems // img_elems))
    else:
        nb = 1
        tm = min(M, _round_down_128(tgt_tile_elems // C))
        # Keep each strided DMA row segment (tm * itemsize per channel row) >= ~2 KiB.
        seg_floor = _round_down_128(max(128, 2048 // itemsize))
        tm = max(tm, min(M, seg_floor))

    # ---- ensure >= 2 grid steps for megacore (v7x) when the work is big ----------
    total_bytes = N * C * M * itemsize
    if (pl.cdiv(N, nb) * pl.cdiv(M, tm)) == 1 and total_bytes >= 2 * 1024 * 1024:
        if M >= 256:
            tm = _round_down_128(-(-M // 2))
        elif nb > 1:
            nb = _largest_divisor_leq(N, max(1, nb // 2))

    grid = (pl.cdiv(N, nb), pl.cdiv(M, tm))               # partial spatial tile handled
    kernel = _sse_kernel_mxu if use_mxu else _sse_kernel_vpu
    # TODO(synk): for M < 128 with C >= 128 a channels-last (M, C) layout would avoid
    # lane-masked stores; not implemented (Nb-image blocking is used instead).

    out3 = pl.pallas_call(
        kernel,
        out_shape=jax.ShapeDtypeStruct((N, C, M), x_nchw.dtype),
        grid_spec=pltpu.PrefetchScalarGridSpec(
            num_scalar_prefetch=0,
            grid=grid,
            in_specs=[
                pl.BlockSpec((nb, C, tm), lambda n, j: (n, 0, j)),  # x tile (lane-dense)
                pl.BlockSpec((C, C), lambda n, j: (0, 0)),          # weight, resident
                pl.BlockSpec((C, 1), lambda n, j: (0, 0)),          # bias,   resident
            ],
            out_specs=pl.BlockSpec((nb, C, tm), lambda n, j: (n, 0, j)),
        ),
        compiler_params=pltpu.CompilerParams(
            dimension_semantics=("parallel", "parallel"),
            vmem_limit_bytes=int(vmem_limit_bytes),
        ),
    )(x3, weight, b_col)

    return out3.reshape(N, C, H, W)


def sse_reference(x_nchw, weight, bias):
    # Pure-JAX (f32) reference of the PyTorch module's forward.
    xf = x_nchw.astype(jnp.float32)
    logits = jnp.einsum('nchw,oc->nohw', xf, weight.astype(jnp.float32),
                        precision=jax.lax.Precision.HIGHEST)
    logits = logits + bias.astype(jnp.float32)[None, :, None, None]
    return xf * jax.nn.sigmoid(logits)


def _make_params(key, C, dtype=jnp.float32):
    kw, kb = jax.random.split(key)
    bound = 1.0 / (C ** 0.5)
    weight = jax.random.uniform(kw, (C, C), minval=-bound, maxval=bound,
                                dtype=jnp.float32).astype(dtype)
    bias = jax.random.uniform(kb, (C,), minval=-bound, maxval=bound,
                              dtype=jnp.float32).astype(dtype)
    return weight, bias


if __name__ == "__main__":
    key = jax.random.PRNGKey(0)
    kx, kp, kx2, kp2, kx3, kx4, kp4 = jax.random.split(key, 7)

    # --- main case: small channels, VPU gate path, whole image per step ----------
    N, C, H, W = 2, 4, 16, 16
    x = jax.random.normal(kx, (N, C, H, W), dtype=jnp.float32)
    weight, bias = _make_params(kp, C)
    out = jax.block_until_ready(sse_forward(x, weight, bias))
    ref = sse_reference(x, weight, bias)
    assert out.shape == ref.shape == (N, C, H, W)
    assert jnp.allclose(out, ref, atol=1e-5, rtol=1e-5), "VPU-path mismatch vs reference"

    # --- larger channels: MXU gate path (default TPU dot precision -> 1e-4 tol) --
    C2, H2, W2 = 64, 8, 8
    x2 = jax.random.normal(kx2, (N, C2, H2, W2), dtype=jnp.float32)
    weight2, bias2 = _make_params(kp2, C2)
    out2 = jax.block_until_ready(sse_forward(x2, weight2, bias2))
    ref2 = sse_reference(x2, weight2, bias2)
    assert jnp.allclose(out2, ref2, atol=1e-4, rtol=1e-4), "MXU-path mismatch vs reference"

    # --- multi-step spatial tiling with a partial last tile ----------------------
    H3, W3 = 40, 32                                   # M = 1280 -> tiles 512, 512, 256
    x3 = jax.random.normal(kx3, (1, C, H3, W3), dtype=jnp.float32)
    out3 = jax.block_until_ready(sse_forward(x3, weight, bias, target_tile_bytes=8192))
    ref3 = sse_reference(x3, weight, bias)
    assert jnp.allclose(out3, ref3, atol=1e-5, rtol=1e-5), "partial-tile mismatch vs reference"

    # --- bf16 inputs: MXU gate in bf16, multiply in native dtype -----------------
    C4 = 16
    x4 = jax.random.normal(kx4, (N, C4, H, W), dtype=jnp.float32).astype(jnp.bfloat16)
    weight4, bias4 = _make_params(kp4, C4, dtype=jnp.bfloat16)
    out4 = jax.block_until_ready(sse_forward(x4, weight4, bias4))
    ref4 = sse_reference(x4, weight4, bias4)
    assert jnp.allclose(out4.astype(jnp.float32), ref4, atol=5e-2, rtol=5e-2), \
        "bf16-path mismatch vs reference"

    print("KERNEL_OK")
</pallas_src>

<mosaic_0001>
module attributes {stable_mosaic.version = 11 : i64} {
  func.func @_sse_kernel_vpu(%arg0: i32, %arg1: i32, %arg2: memref<2x4x256xf32, #tpu.memory_space<vmem>>, %arg3: memref<4x4xf32, #tpu.memory_space<vmem>>, %arg4: memref<4x1xf32, #tpu.memory_space<vmem>>, %arg5: memref<2x4x256xf32, #tpu.memory_space<vmem>>) attributes {dimension_semantics = [#tpu.dimension_semantics<parallel>, #tpu.dimension_semantics<parallel>], iteration_bounds = array<i64: 1, 1>, scalar_prefetch = 0 : i64, scratch_operands = 0 : i64, tpu.core_type = #tpu.core_type<tc>, window_params = [{transform_indices = @transform_0, window_bounds = array<i64: 2, 4, 256>}, {pipeline_mode = #tpu.pipeline_mode<synchronous>, transform_indices = @transform_1, window_bounds = array<i64: 4, 4>}, {pipeline_mode = #tpu.pipeline_mode<synchronous>, transform_indices = @transform_2, window_bounds = array<i64: 4, 1>}, {transform_indices = @transform_3, window_bounds = array<i64: 2, 4, 256>}]} {
    %c0 = arith.constant 0 : index
    %c0_0 = arith.constant 0 : index
    %c0_1 = arith.constant 0 : index
    %0 = vector.load %arg2[%c0, %c0_0, %c0_1] : memref<2x4x256xf32, #tpu.memory_space<vmem>>, vector<2x4x256xf32>
    %c0_2 = arith.constant 0 : index
    %c0_3 = arith.constant 0 : index
    %1 = vector.load %arg3[%c0_2, %c0_3] : memref<4x4xf32, #tpu.memory_space<vmem>>, vector<4x4xf32>
    %c0_4 = arith.constant 0 : index
    %c0_5 = arith.constant 0 : index
    %2 = vector.load %arg4[%c0_4, %c0_5] : memref<4x1xf32, #tpu.memory_space<vmem>>, vector<4x1xf32>
    %3 = vector.shape_cast %2 : vector<4x1xf32> to vector<1x4x1xf32>
    %4 = vector.shape_cast %3 : vector<1x4x1xf32> to vector<1x4x1xf32>
    %5 = vector.broadcast %4 : vector<1x4x1xf32> to vector<2x4x256xf32>
    %6 = vector.extract_strided_slice %1 {offsets = [0, 0], sizes = [4, 1], strides = [1, 1]} : vector<4x4xf32> to vector<4x1xf32>
    %7 = vector.shape_cast %6 : vector<4x1xf32> to vector<1x4x1xf32>
    %8 = vector.extract_strided_slice %0 {offsets = [0, 0, 0], sizes = [2, 1, 256], strides = [1, 1, 1]} : vector<2x4x256xf32> to vector<2x1x256xf32>
    %9 = vector.broadcast %7 : vector<1x4x1xf32> to vector<2x4x256xf32>
    %10 = vector.broadcast %8 : vector<2x1x256xf32> to vector<2x4x256xf32>
    %11 = arith.mulf %9, %10 : vector<2x4x256xf32>
    %12 = arith.addf %5, %11 : vector<2x4x256xf32>
    %13 = vector.extract_strided_slice %1 {offsets = [0, 1], sizes = [4, 1], strides = [1, 1]} : vector<4x4xf32> to vector<4x1xf32>
    %14 = vector.shape_cast %13 : vector<4x1xf32> to vector<1x4x1xf32>
    %15 = vector.extract_strided_slice %0 {offsets = [0, 1, 0], sizes = [2, 1, 256], strides = [1, 1, 1]} : vector<2x4x256xf32> to vector<2x1x256xf32>
    %16 = vector.broadcast %14 : vector<1x4x1xf32> to vector<2x4x256xf32>
    %17 = vector.broadcast %15 : vector<2x1x256xf32> to vector<2x4x256xf32>
    %18 = arith.mulf %16, %17 : vector<2x4x256xf32>
    %19 = arith.addf %12, %18 : vector<2x4x256xf32>
    %20 = vector.extract_strided_slice %1 {offsets = [0, 2], sizes = [4, 1], strides = [1, 1]} : vector<4x4xf32> to vector<4x1xf32>
    %21 = vector.shape_cast %20 : vector<4x1xf32> to vector<1x4x1xf32>
    %22 = vector.extract_strided_slice %0 {offsets = [0, 2, 0], sizes = [2, 1, 256], strides = [1, 1, 1]} : vector<2x4x256xf32> to vector<2x1x256xf32>
    %23 = vector.broadcast %21 : vector<1x4x1xf32> to vector<2x4x256xf32>
    %24 = vector.broadcast %22 : vector<2x1x256xf32> to vector<2x4x256xf32>
    %25 = arith.mulf %23, %24 : vector<2x4x256xf32>
    %26 = arith.addf %19, %25 : vector<2x4x256xf32>
    %27 = vector.extract_strided_slice %1 {offsets = [0, 3], sizes = [4, 1], strides = [1, 1]} : vector<4x4xf32> to vector<4x1xf32>
    %28 = vector.shape_cast %27 : vector<4x1xf32> to vector<1x4x1xf32>
    %29 = vector.extract_strided_slice %0 {offsets = [0, 3, 0], sizes = [2, 1, 256], strides = [1, 1, 1]} : vector<2x4x256xf32> to vector<2x1x256xf32>
    %30 = vector.broadcast %28 : vector<1x4x1xf32> to vector<2x4x256xf32>
    %31 = vector.broadcast %29 : vector<2x1x256xf32> to vector<2x4x256xf32>
    %32 = arith.mulf %30, %31 : vector<2x4x256xf32>
    %33 = arith.addf %26, %32 : vector<2x4x256xf32>
    %34 = arith.negf %33 : vector<2x4x256xf32>
    %35 = math.exp %34 : vector<2x4x256xf32>
    %cst = arith.constant 1.000000e+00 : f32
    %36 = vector.broadcast %cst : f32 to vector<2x4x256xf32>
    %37 = arith.addf %36, %35 : vector<2x4x256xf32>
    %38 = arith.divf %36, %37 : vector<2x4x256xf32>
    %39 = arith.mulf %0, %38 : vector<2x4x256xf32>
    %c0_6 = arith.constant 0 : index
    %c0_7 = arith.constant 0 : index
    %c0_8 = arith.constant 0 : index
    %40 = vector.load %arg5[%c0_6, %c0_7, %c0_8] : memref<2x4x256xf32, #tpu.memory_space<vmem>>, vector<2x4x256xf32>
    tpu.vector_store %arg5[%c0_6, %c0_7, %c0_8], %39 {strides = array<i32>} : memref<2x4x256xf32, #tpu.memory_space<vmem>>, vector<2x4x256xf32>,
    return
  }
  func.func @transform_0(%arg0: i32, %arg1: i32) -> (i32, i32, i32) {
    %c0_i32 = arith.constant 0 : i32
    %c0_i32_0 = arith.constant 0 : i32
    return %arg0, %c0_i32, %arg1 : i32, i32, i32
  }
  func.func @transform_1(%arg0: i32, %arg1: i32) -> (i32, i32) {
    %c0_i32 = arith.constant 0 : i32
    %c0_i32_0 = arith.constant 0 : i32
    %c0_i32_1 = arith.constant 0 : i32
    return %c0_i32, %c0_i32_0 : i32, i32
  }
  func.func @transform_2(%arg0: i32, %arg1: i32) -> (i32, i32) {
    %c0_i32 = arith.constant 0 : i32
    %c0_i32_0 = arith.constant 0 : i32
    %c0_i32_1 = arith.constant 0 : i32
    return %c0_i32, %c0_i32_0 : i32, i32
  }
  func.func @transform_3(%arg0: i32, %arg1: i32) -> (i32, i32, i32) {
    %c0_i32 = arith.constant 0 : i32
    %c0_i32_0 = arith.constant 0 : i32
    return %arg0, %c0_i32, %arg1 : i32, i32, i32
  }
}

</mosaic_0001>

<llo_original>
// kernel: tpu_custom_call.1
$region0: #{tpu_custom_call.1}
  #allocation0 [shape = 'u32[]', space=smem, size = 0x4, offset = 0x4, fixed_abs, tag = 'smem constant byte address 0x4 - core index']
  #allocation1 [shape = 'u32[72,128]{1,0:T(1,128)}', space=vmem, size = 0x9000, scoped, tag = 'internal scratch']
  %s0 = inlined_call_operand.hbm [shape: f32[2,4,256], index: 0, kind: input, shape index: {}]
  %s1 = inlined_call_operand.vmem [shape: f32[4,4], index: 1, kind: input, shape index: {}]
  %s2 = inlined_call_operand.vmem [shape: f32[4,1], index: 2, kind: input, shape index: {}]
  %s3 = inlined_call_operand.hbm [shape: f32[2,4,256], index: 3, kind: output, shape index: {}]
  %s4 = sld [smem:[#allocation0]]
  $region26: #{tpu_custom_call.1} parent=0
    _
  %s6 = ssub.s32 1, %s4
  %s7 = scalar_select 0, %s6, %s4
  $region1: #{tpu_custom_call.1} parent=0
    #allocation2 [shape = 'u8[8192]{0}', space=vmem, size = 0x2000, scoped, tag = 'input window, operand 0, single buffered']
    #allocation3 [shape = 's32[1]{0}', space=sflag, size = 0x4, scoped, tag = 'scoped memory for tpu_custom_call.1']
    #allocation4 [shape = 's32[1]{0}', space=sflag, size = 0x4, scoped, tag = 'scoped memory for tpu_custom_call.1']
    #allocation5 [shape = 'u8[8192]{0}', space=vmem, size = 0x2000, scoped, tag = 'output window, operand 0, single buffered']
    %8 = vsyncpa [#allocation3], 0
    %9 = vsyncpa [#allocation4], 0
    // Predicated region
    $region2: #{tpu_custom_call.1} parent=1 // pred_check
      _
    $region3: #{tpu_custom_call.1} parent=1 // pred_check_branch
      %11 = sbr.rel (0) target = $region5
    $region4: #{tpu_custom_call.1} parent=1 // pred_region
      %13 = vsyncadd [#allocation3], 0
      %s14 = sshll.u32 %s0, 4
      %s15 = int_to_ptr.hbm [resolvable:$true] %s14
      %s16 = sshll.u32 [#allocation2], 4
      %s17 = int_to_ptr.vmem [resolvable:$true] %s16
      %22 = dma.hbm_to_vmem [thread:$0]  %s15, 256, %s17, [#allocation3], 128, 128, 8
    $region5: #{tpu_custom_call.1} parent=1 // pred_fallthru
      _
    // Predicated region
    $region6: #{tpu_custom_call.1} parent=1 // pred_check
      _
    $region7: #{tpu_custom_call.1} parent=1 // pred_check_branch
      %24 = sbr.rel (0) target = $region9
    $region8: #{tpu_custom_call.1} parent=1 // pred_region
      _
    $region9: #{tpu_custom_call.1} parent=1 // pred_fallthru
      _
    // Predicated region
    $region10: #{tpu_custom_call.1} parent=1 // pred_check
      _
    $region11: #{tpu_custom_call.1} parent=1 // pred_check_branch
      %26 = sbr.rel (0) target = $region13
    $region12: #{tpu_custom_call.1} parent=1 // pred_region
      _
    $region13: #{tpu_custom_call.1} parent=1 // pred_fallthru
      _
    // Predicated region
    $region14: #{tpu_custom_call.1} parent=1 // pred_check
      _
    $region15: #{tpu_custom_call.1} parent=1 // pred_check_branch
      %28 = sbr.rel (0) target = $region17
    $region16: #{tpu_custom_call.1} parent=1 // pred_region
      %30 = dma.done [#allocation3], 256
    $region17: #{tpu_custom_call.1} parent=1 // pred_fallthru
      _
    %v31 = vld [vmem:[#allocation2] sm:$0xff]
    %v32 = vld [vmem:[#allocation2 + $0x8] sm:$0xff]
    %v33 = vld [vmem:[%s1] sm:$0xf]
    %v34 = vld [vmem:[%s2] sm:$0xf]
    %36 = vset.pattern.permute.xlu0 0
    %37 = vperm.xlu0 %36, %v34
    %v38 = vpop.permute.xlu0 %37
    %41 = vset.pattern.permute.xlu0 0
    %42 = vperm.xlu0 %41, %v33
    %v43 = vpop.permute.xlu0 %42
    %v47 = vperm.slane %v31, 0
    %v48 = vperm.slane %v31, 4
    %v49 = vperm.slane %v32, 0
    %v50 = vperm.slane %v32, 4
    %v55 = vperm.slane %v47, 0
    %v56 = vperm.slane %v48, 0
    %v57 = vperm.slane %v49, 0
    %v58 = vperm.slane %v50, 0
    %v59 = vmul.f32 %v43, %v55
    %v60 = vmul.f32 %v43, %v56
    %v61 = vmul.f32 %v43, %v57
    %v62 = vmul.f32 %v43, %v58
    %v63 = vadd.f32 %v38, %v59
    %v64 = vadd.f32 %v38, %v60
    %v65 = vadd.f32 %v38, %v61
    %v66 = vadd.f32 %v38, %v62
    %67 = vset.pattern.permute.xlu0 1
    %68 = vperm.xlu0 %67, %v33
    %v69 = vpop.permute.xlu0 %68
    %v71 = vperm.slane %v31, 1
    %v72 = vperm.slane %v31, 5
    %v73 = vperm.slane %v32, 1
    %v74 = vperm.slane %v32, 5
    %v79 = vperm.slane %v71, 1
    %v80 = vperm.slane %v72, 1
    %v81 = vperm.slane %v73, 1
    %v82 = vperm.slane %v74, 1
    %v83 = vmul.f32 %v69, %v79
    %v84 = vmul.f32 %v69, %v80
    %v85 = vmul.f32 %v69, %v81
    %v86 = vmul.f32 %v69, %v82
    %v87 = vadd.f32 %v63, %v83
    %v88 = vadd.f32 %v64, %v84
    %v89 = vadd.f32 %v65, %v85
    %v90 = vadd.f32 %v66, %v86
    %91 = vset.pattern.permute.xlu0 2
    %92 = vperm.xlu0 %91, %v33
    %v93 = vpop.permute.xlu0 %92
    %v95 = vperm.slane %v31, 2
    %v96 = vperm.slane %v31, 6
    %v97 = vperm.slane %v32, 2
    %v98 = vperm.slane %v32, 6
    %v103 = vperm.slane %v95, 2
    %v104 = vperm.slane %v96, 2
    %v105 = vperm.slane %v97, 2
    %v106 = vperm.slane %v98, 2
    %v107 = vmul.f32 %v93, %v103
    %v108 = vmul.f32 %v93, %v104
    %v109 = vmul.f32 %v93, %v105
    %v110 = vmul.f32 %v93, %v106
    %v111 = vadd.f32 %v87, %v107
    %v112 = vadd.f32 %v88, %v108
    %v113 = vadd.f32 %v89, %v109
    %v114 = vadd.f32 %v90, %v110
    %115 = vset.pattern.permute.xlu0 3
    %116 = vperm.xlu0 %115, %v33
    %v117 = vpop.permute.xlu0 %116
    %v119 = vperm.slane %v31, 3
    %v120 = vperm.slane %v31, 7
    %v121 = vperm.slane %v32, 3
    %v122 = vperm.slane %v32, 7
    %v127 = vperm.slane %v119, 3
    %v128 = vperm.slane %v120, 3
    %v129 = vperm.slane %v121, 3
    %v130 = vperm.slane %v122, 3
    %v131 = vmul.f32 %v117, %v127
    %v132 = vmul.f32 %v117, %v128
    %v133 = vmul.f32 %v117, %v129
    %v134 = vmul.f32 %v117, %v130
    %v135 = vadd.f32 %v111, %v131
    %v136 = vadd.f32 %v112, %v132
    %v137 = vadd.f32 %v113, %v133
    %v138 = vadd.f32 %v114, %v134
    %v139 = vxor.u32 %v135, 2147483648
    %v140 = vxor.u32 %v136, 2147483648
    %v141 = vxor.u32 %v137, 2147483648
    %v142 = vxor.u32 %v138, 2147483648
    %v143 = vmul.f32 %v139, 1.442695
    %v144 = vpow.pop %v143
    %v145 = vmul.f32 %v140, 1.442695
    %v146 = vpow.pop %v145
    %v147 = vmul.f32 %v141, 1.442695
    %v148 = vpow.pop %v147
    %v149 = vmul.f32 %v142, 1.442695
    %v150 = vpow.pop %v149
    %v151 = vadd.f32 %v144, 1.0
    %v152 = vadd.f32 %v146, 1.0
    %v153 = vadd.f32 %v148, 1.0
    %v154 = vadd.f32 %v150, 1.0
    %v155 = vrcp.pop %v151
    %v156 = vmul.f32 %v151, %v155
    %v157 = vsub.f32 1.0, %v156
    %v158 = vmul.f32 %v155, %v157
    %v159 = vadd.f32 %v155, %v158
    %vm160 = vweird.f32 %v151
    %vm161 = vweird.f32 %v155
    %vm162 = vmor %vm160, %vm161
    %v163 = vsel %vm162, %v155, %v159
    %v164 = vand.u32 2147483647, %v151
    %vm165 = vcmp.eq.f32.partialorder %v164, 8.507059e+37
    %v166 = vand.u32 %v151, 2147483648
    %v167 = vor.u32 1.1754944e-38, %v166
    %v168 = vsel %vm165, %v167, %v163
    %v169 = vmul.f32 1.0, %v168
    %v170 = vrcp.pop %v152
    %v171 = vmul.f32 %v152, %v170
    %v172 = vsub.f32 1.0, %v171
    %v173 = vmul.f32 %v170, %v172
    %v174 = vadd.f32 %v170, %v173
    %vm175 = vweird.f32 %v152
    %vm176 = vweird.f32 %v170
    %vm177 = vmor %vm175, %vm176
    %v178 = vsel %vm177, %v170, %v174
    %v179 = vand.u32 2147483647, %v152
    %vm180 = vcmp.eq.f32.partialorder %v179, 8.507059e+37
    %v181 = vand.u32 %v152, 2147483648
    %v182 = vor.u32 1.1754944e-38, %v181
    %v183 = vsel %vm180, %v182, %v178
    %v184 = vmul.f32 1.0, %v183
    %v185 = vrcp.pop %v153
    %v186 = vmul.f32 %v153, %v185
    %v187 = vsub.f32 1.0, %v186
    %v188 = vmul.f32 %v185, %v187
    %v189 = vadd.f32 %v185, %v188
    %vm190 = vweird.f32 %v153
    %vm191 = vweird.f32 %v185
    %vm192 = vmor %vm190, %vm191
    %v193 = vsel %vm192, %v185, %v189
    %v194 = vand.u32 2147483647, %v153
    %vm195 = vcmp.eq.f32.partialorder %v194, 8.507059e+37
    %v196 = vand.u32 %v153, 2147483648
    %v197 = vor.u32 1.1754944e-38, %v196
    %v198 = vsel %vm195, %v197, %v193
    %v199 = vmul.f32 1.0, %v198
    %v200 = vrcp.pop %v154
    %v201 = vmul.f32 %v154, %v200
    %v202 = vsub.f32 1.0, %v201
    %v203 = vmul.f32 %v200, %v202
    %v204 = vadd.f32 %v200, %v203
    %vm205 = vweird.f32 %v154
    %vm206 = vweird.f32 %v200
    %vm207 = vmor %vm205, %vm206
    %v208 = vsel %vm207, %v200, %v204
    %v209 = vand.u32 2147483647, %v154
    %vm210 = vcmp.eq.f32.partialorder %v209, 8.507059e+37
    %v211 = vand.u32 %v154, 2147483648
    %v212 = vor.u32 1.1754944e-38, %v211
    %v213 = vsel %vm210, %v212, %v208
    %v214 = vmul.f32 1.0, %v213
    %v219 = vrot.slane %v184, 4
    %v220 = vrot.slane %v214, 4
    %vm221 = vcmask 1043456
    %v222 = vsel %vm221, %v169, %v219
    %v223 = vsel %vm221, %v199, %v220
    %v226 = vmul.f32 %v31, %v222
    %v227 = vmul.f32 %v32, %v223
    %228 = vst [vmem:[#allocation5] sm:$0xff] %v226
    %229 = vst [vmem:[#allocation5 + $0x8] sm:$0xff] %v227
    // Predicated region
    $region18: #{tpu_custom_call.1} parent=1 // pred_check
      _
    $region19: #{tpu_custom_call.1} parent=1 // pred_check_branch
      %231 = sbr.rel (0) target = $region21
    $region20: #{tpu_custom_call.1} parent=1 // pred_region
      %233 = vsyncadd [#allocation4], 0
      %s234 = sshll.u32 [#allocation5], 4
      %s235 = int_to_ptr.vmem [resolvable:$true] %s234
      %s236 = sshll.u32 %s3, 4
      %s237 = int_to_ptr.hbm [resolvable:$true] %s236
      %242 = dma.vmem_to_hbm [thread:$0]  %s235, 256, %s237, [#allocation4], 128, 128, 8
    $region21: #{tpu_custom_call.1} parent=1 // pred_fallthru
      _
    // Predicated region
    $region22: #{tpu_custom_call.1} parent=1 // pred_check
      _
    $region23: #{tpu_custom_call.1} parent=1 // pred_check_branch
      %244 = sbr.rel (0) target = $region25
    $region24: #{tpu_custom_call.1} parent=1 // pred_region
      %246 = dma.done [#allocation4], 256
    $region25: #{tpu_custom_call.1} parent=1 // pred_fallthru
      _
    %247 = vsyncpa [#allocation3], 1
    %248 = vsyncpa [#allocation4], 1

</llo_original>
